<compile_context>
chip_gen: v5e
topology: v5e:2x2
jax: 0.10.0
libtpu: 0.0.40
codegen_flags: <defaults>
</compile_context>

<pallas_src>
from functools import partial

import jax
import jax.numpy as jnp
from jax.experimental import pallas as pl
from jax.experimental.pallas import tpu as pltpu

HIDDEN = 256      # enc conv output channels (fixed by the module)
MAX_BLOCK = 64    # upper bound on ROI images folded into one grid step


# --------------------------------------------------------------------------- #
# Kernel                                                                       #
# --------------------------------------------------------------------------- #
def _shape_branch_se_kernel(xcol_ref, w1_ref, b1_ref, we_ref, be_ref, *rest,
                            blk, hw, hw_pad, compute_dec):
    # xcol_ref : (blk*hw_pad, 9*Cin) bf16 im2col rows for blk images
    # w1_ref   : (9*Cin, 256)        bf16 3x3 conv weights (im2col layout)
    # b1_ref   : (1, 256)  f32 conv bias
    # we_ref   : (256, E), be_ref: (1, E)        fc_embed
    # training only:
    #   wd_ref : (E, 256), bd_ref: (1, 256)      fc_decode
    #   wdec_ref: (1, 256) dec 1x1 conv weights as a lane row
    #   bdec_ref: (1,) f32 scalar in SMEM        dec 1x1 conv bias
    # outputs: emb_ref (blk, E) [, dec_ref (blk, 1) when training]
    if compute_dec:
        wd_ref, bd_ref, wdec_ref, bdec_ref, emb_ref, dec_ref = rest
    else:
        (emb_ref,) = rest

    # enc: 3x3 conv as ONE im2col matmul (bf16 operands, f32 accumulate),
    # bias + ReLU epilogue kept in f32 (co-issues under the MXU result pop).
    hidden = jnp.dot(xcol_ref[...], w1_ref[...],
                     preferred_element_type=jnp.float32)             # (blk*hw_pad, 256)
    hidden = jnp.maximum(hidden + b1_ref[...], 0.0)

    # AdaptiveAvgPool2d((1,1)): layout-free reshape (hw_pad % 8 == 0) + sublane sum
    # on the VPU/XLU, with the 1/HW scale applied in f32 (exact for any HW).
    h3 = hidden.reshape(blk, hw_pad, HIDDEN)
    if hw_pad != hw:
        h3 = h3[:, :hw, :]     # drop zero-padded rows (they carry ReLU(b1) garbage)
    vec = jnp.sum(h3, axis=1) * (1.0 / hw)                           # (blk, 256)

    # fc_embed -> the branch output (tiny f32 matmul).
    emb = jnp.dot(vec, we_ref[...],
                  preferred_element_type=jnp.float32) + be_ref[...]
    emb_ref[...] = emb

    if compute_dec:
        # dec path (training only): fc_decode -> ReLU -> 1x1 conv
        # (VPU multiply + lane reduction instead of a 1-column MXU op).
        hdec = jnp.maximum(
            jnp.dot(emb, wd_ref[...], preferred_element_type=jnp.float32)
            + bd_ref[...], 0.0)                                      # (blk, 256)
        dec_ref[...] = (jnp.sum(hdec * wdec_ref[...], axis=-1, keepdims=True)
                        + bdec_ref[0])


# --------------------------------------------------------------------------- #
# Host-side helpers                                                            #
# --------------------------------------------------------------------------- #
def _round_up(x, m):
    return (x + m - 1) // m * m


_VMEM_CAP = None


def _vmem_capacity_bytes():
    global _VMEM_CAP
    if _VMEM_CAP is None:
        try:
            _VMEM_CAP = int(pltpu.get_tpu_info().vmem_capacity_bytes)
        except Exception:
            _VMEM_CAP = 64 << 20          # conservative default (v7x per-TensorCore)
    return _VMEM_CAP


def _const_spec_factory():
    """Grid-invariant operands: single-buffer them when pipeline_mode is supported."""
    try:
        pl.BlockSpec((8, 128), lambda n: (0, 0), pipeline_mode=pl.Buffered(1))

        def make(shape):
            return pl.BlockSpec(shape, lambda n: (0,) * len(shape),
                                pipeline_mode=pl.Buffered(1))
        return make
    except Exception:
        return lambda shape: pl.BlockSpec(shape, lambda n: (0,) * len(shape))


_const_spec = _const_spec_factory()


def _choose_block(n, hw_pad, k9):
    """VMEM-budgeted images-per-step; grid split into >=2 steps when N > 8."""
    budget = (min(_vmem_capacity_bytes(), 64 << 20) * 3) // 8     # ~24 MiB of blocks
    k9_lanes = _round_up(k9, 128)                                 # VMEM lane padding
    per_img = hw_pad * (2 * 2 * k9_lanes      # bf16 im2col rows, double-buffered
                        + 4 * HIDDEN)         # f32 hidden intermediate
    blk_cap = max(8, min(MAX_BLOCK, budget // per_img))
    if n <= 8:
        return n, 1                          # whole batch is one (full-array) block
    # >=2 steps so both v7x TensorCores get work; blk sublane-aligned for the
    # (blk, emb_dim) output block.
    steps = 2 if n <= blk_cap else pl.cdiv(n, blk_cap)
    blk = _round_up(pl.cdiv(n, steps), 8)
    steps = pl.cdiv(n, blk)
    return blk, steps


def _im2col_3x3(x_nchw, hw_pad):
    """NCHW -> (N*hw_pad, 9*Cin) im2col rows for a 3x3 'same' conv.

    Rows per image are zero-padded from H*W up to hw_pad (multiple of 8) so the
    in-kernel reshape to (blk, hw_pad, 256) is layout-free.
    """
    N, Cin, H, W = x_nchw.shape
    x = jnp.transpose(x_nchw, (0, 2, 3, 1))                          # NHWC
    xp = jnp.pad(x, ((0, 0), (1, 1), (1, 1), (0, 0)))
    taps = [xp[:, dy:dy + H, dx:dx + W, :]
            for dy in range(3) for dx in range(3)]                   # 9 x (N,H,W,Cin)
    xcol = jnp.concatenate(taps, axis=-1).reshape(N, H * W, 9 * Cin)
    if hw_pad != H * W:
        xcol = jnp.pad(xcol, ((0, 0), (0, hw_pad - H * W), (0, 0)))
    return xcol.reshape(N * hw_pad, 9 * Cin)


@partial(jax.jit, static_argnames=("training",))
def shape_branch_se_apply(x_nchw, params, training=False):
    """One roi_pooled tensor (N, Cin, H, W) -> emb (N, E) [, decoded (N, 1) if training]."""
    w1_col, b1, w_embed, b_embed, w_decode, b_decode, w_dec, b_dec = params
    N, Cin, H, W = x_nchw.shape
    HW, K9 = H * W, 9 * Cin
    hw_pad = _round_up(HW, 8)
    emb_dim = w_embed.shape[1]

    blk, steps = _choose_block(N, hw_pad, K9)
    n_pad = blk * steps

    # Host-side (XLA) layout plumbing: im2col rows, bf16 MXU operands.  The block
    # spans the full K9 minor dim, so each grid step's input DMA is one contiguous
    # HBM read.
    # TODO(synk): stream the padded NHWC block and build the 9 taps in-kernel to
    # drop the 9x im2col HBM copy (needs Mosaic-safe window slicing at small Cin).
    xcol = _im2col_3x3(x_nchw, hw_pad).astype(jnp.bfloat16)          # (N*hw_pad, K9)
    if n_pad != N:
        xcol = jnp.pad(xcol, ((0, (n_pad - N) * hw_pad), (0, 0)))

    in_specs = [
        pl.BlockSpec((blk * hw_pad, K9), lambda n: (n, 0)),          # streamed im2col
        _const_spec((K9, HIDDEN)),                                   # conv W
        _const_spec((1, HIDDEN)),                                    # conv b
        _const_spec((HIDDEN, emb_dim)),                              # fc_embed W
        _const_spec((1, emb_dim)),                                   # fc_embed b
    ]
    operands = [xcol, w1_col, b1, w_embed, b_embed]
    out_shape = jax.ShapeDtypeStruct((n_pad, emb_dim), jnp.float32)
    out_specs = pl.BlockSpec((blk, emb_dim), lambda n: (n, 0))
    if training:
        in_specs += [
            _const_spec((emb_dim, HIDDEN)),                          # fc_decode W
            _const_spec((1, HIDDEN)),                                # fc_decode b
            _const_spec((1, HIDDEN)),                                # dec 1x1 W
            pl.BlockSpec(memory_space=pltpu.MemorySpace.SMEM),       # dec 1x1 b (scalar)
        ]
        operands += [w_decode, b_decode, w_dec, b_dec]
        out_shape = (out_shape, jax.ShapeDtypeStruct((n_pad, 1), jnp.float32))
        out_specs = (out_specs, pl.BlockSpec((blk, 1), lambda n: (n, 0)))

    vmem_limit = (min(_vmem_capacity_bytes(), 64 << 20) * 3) // 4    # ~48 MiB

    result = pl.pallas_call(
        partial(_shape_branch_se_kernel, blk=blk, hw=HW, hw_pad=hw_pad,
                compute_dec=training),
        out_shape=out_shape,
        grid_spec=pltpu.PrefetchScalarGridSpec(
            num_scalar_prefetch=0,
            grid=(steps,),
            in_specs=in_specs,
            out_specs=out_specs,
        ),
        compiler_params=pltpu.CompilerParams(
            dimension_semantics=("parallel",),
            vmem_limit_bytes=int(vmem_limit)),
    )(*operands)

    if training:
        emb, decoded = result
        return emb[:N], decoded[:N]
    return result[:N]


# --------------------------------------------------------------------------- #
# Module-level forward + loss glue                                             #
# --------------------------------------------------------------------------- #
def _bce_with_logits(logits, targets):
    """F.binary_cross_entropy_with_logits, mean reduction."""
    return jnp.mean(jnp.maximum(logits, 0.0) - logits * targets
                    + jnp.log1p(jnp.exp(-jnp.abs(logits))))


def shape_branch_se_forward(roi_pooled, params, gt_masks=None, training=False):
    """Mirrors ShapeBranchSE.forward: returns (outputs, aux_losses)."""
    outputs, aux_losses = [], {}
    for idx, feats in enumerate(roi_pooled):
        if training and gt_masks is not None:
            emb, decoded = shape_branch_se_apply(feats, params, training=True)
            # adaptive_avg_pool2d((1,1)) of the GT mask == its spatial mean.
            # TODO(synk): GT-mask pooling / BCE loss stays as plain-JAX glue
            # (variable mask sizes), not inside the Pallas kernel.
            m = jnp.mean(gt_masks[idx].astype(jnp.float32), axis=(1, 2))[:, None]
            aux_losses[f"shape_loss_{idx}"] = _bce_with_logits(decoded, m)
        else:
            emb = shape_branch_se_apply(feats, params, training=False)
        outputs.append(emb)
    return outputs, aux_losses


def make_params(key, in_channels, embedding_dim=128):
    """Deterministic synthetic parameters matching the PyTorch module shapes."""
    ks = jax.random.split(key, 8)
    w1_oihw = 0.1 * jax.random.normal(ks[0], (HIDDEN, in_channels, 3, 3), jnp.float32)
    b1 = 0.01 * jax.random.normal(ks[1], (HIDDEN,), jnp.float32)
    w_embed = 0.1 * jax.random.normal(ks[2], (embedding_dim, HIDDEN), jnp.float32)
    b_embed = 0.01 * jax.random.normal(ks[3], (embedding_dim,), jnp.float32)
    w_decode = 0.1 * jax.random.normal(ks[4], (HIDDEN, embedding_dim), jnp.float32)
    b_decode = 0.01 * jax.random.normal(ks[5], (HIDDEN,), jnp.float32)
    w_dec_oihw = 0.1 * jax.random.normal(ks[6], (1, HIDDEN, 1, 1), jnp.float32)
    b_dec = 0.01 * jax.random.normal(ks[7], (1,), jnp.float32)

    torch_params = (w1_oihw, b1, w_embed, b_embed, w_decode, b_decode,
                    w_dec_oihw, b_dec)

    # Kernel layout: im2col conv weights (bf16), row biases, in->out linears.
    w1_col = jnp.transpose(w1_oihw, (2, 3, 1, 0)).reshape(
        9 * in_channels, HIDDEN).astype(jnp.bfloat16)
    kernel_params = (
        w1_col,
        b1.reshape(1, HIDDEN),
        w_embed.T,                                   # (256, E)
        b_embed.reshape(1, embedding_dim),
        w_decode.T,                                  # (E, 256)
        b_decode.reshape(1, HIDDEN),
        w_dec_oihw.reshape(1, HIDDEN),               # (1, 256)
        b_dec.reshape(1),
    )
    return kernel_params, torch_params


def reference_forward(roi_pooled, torch_params):
    """Plain-JAX reference (NCHW / OIHW / torch Linear layout).

    The 3x3-conv operands are rounded to bf16 to mirror the kernel's bf16 MXU
    operands; accumulation and everything downstream stay in f32.
    """
    (w1_oihw, b1, w_embed, b_embed, w_decode, b_decode,
     w_dec_oihw, b_dec) = torch_params
    hi = jax.lax.Precision.HIGHEST
    w1_b = w1_oihw.astype(jnp.bfloat16).astype(jnp.float32)
    embs, decs = [], []
    for x in roi_pooled:
        x_b = x.astype(jnp.bfloat16).astype(jnp.float32)
        h = jax.lax.conv_general_dilated(
            x_b, w1_b, (1, 1), "SAME",
            dimension_numbers=("NCHW", "OIHW", "NCHW"), precision=hi)
        h = jnp.maximum(h + b1[None, :, None, None], 0.0)
        vec = jnp.mean(h, axis=(2, 3))                               # (N, 256)
        emb = jnp.matmul(vec, w_embed.T, precision=hi) + b_embed
        hdec = jnp.maximum(jnp.matmul(emb, w_decode.T, precision=hi) + b_decode, 0.0)
        dec = jnp.matmul(hdec, w_dec_oihw.reshape(1, HIDDEN).T, precision=hi) + b_dec
        embs.append(emb)
        decs.append(dec)
    return embs, decs


if __name__ == "__main__":
    key = jax.random.PRNGKey(0)
    kp, kx1, kx2, km1, km2 = jax.random.split(key, 5)

    in_channels, embedding_dim = 4, 128
    params, torch_params = make_params(kp, in_channels, embedding_dim)

    # Small ROI feature maps, list input as in the PyTorch forward.
    roi_pooled = [
        jax.random.normal(kx1, (2, in_channels, 16, 16), jnp.float32),
        jax.random.normal(kx2, (3, in_channels, 8, 8), jnp.float32),
    ]

    # Eval-mode forward (module API: returns (outputs, aux_losses)); dec path skipped.
    outputs, aux_losses = shape_branch_se_forward(roi_pooled, params)
    outputs = [jax.block_until_ready(o) for o in outputs]
    assert aux_losses == {}

    # Correctness: inference + training kernel variants vs plain-JAX reference.
    ref_embs, ref_decs = reference_forward(roi_pooled, torch_params)
    for feats, out_emb, ref_emb, ref_dec in zip(roi_pooled, outputs, ref_embs, ref_decs):
        emb_t, dec_t = shape_branch_se_apply(feats, params, training=True)
        emb_t = jax.block_until_ready(emb_t)
        dec_t = jax.block_until_ready(dec_t)
        assert out_emb.shape == ref_emb.shape
        assert emb_t.shape == ref_emb.shape and dec_t.shape == ref_dec.shape
        assert jnp.allclose(out_emb, ref_emb, atol=2e-3, rtol=2e-3), (
            float(jnp.max(jnp.abs(out_emb - ref_emb))))
        assert jnp.allclose(emb_t, ref_emb, atol=2e-3, rtol=2e-3), (
            float(jnp.max(jnp.abs(emb_t - ref_emb))))
        assert jnp.allclose(dec_t, ref_dec, atol=2e-3, rtol=2e-3), (
            float(jnp.max(jnp.abs(dec_t - ref_dec))))

    # Training-mode path (aux reconstruction loss against pooled GT masks).
    gt_masks = [
        jax.random.bernoulli(km1, 0.5, (2, 28, 28)).astype(jnp.float32),
        jax.random.bernoulli(km2, 0.5, (3, 28, 28)).astype(jnp.float32),
    ]
    _, train_losses = shape_branch_se_forward(
        roi_pooled, params, gt_masks=gt_masks, training=True)
    assert set(train_losses) == {"shape_loss_0", "shape_loss_1"}
    for v in train_losses.values():
        assert bool(jnp.isfinite(jax.block_until_ready(v)))

    print("KERNEL_OK")
</pallas_src>

<mosaic_0001>
module attributes {stable_mosaic.version = 11 : i64} {
  func.func @_shape_branch_se_kernel(%arg0: i32, %arg1: memref<512x36xbf16, #tpu.memory_space<vmem>>, %arg2: memref<36x256xbf16, #tpu.memory_space<vmem>>, %arg3: memref<1x256xf32, #tpu.memory_space<vmem>>, %arg4: memref<256x128xf32, #tpu.memory_space<vmem>>, %arg5: memref<1x128xf32, #tpu.memory_space<vmem>>, %arg6: memref<2x128xf32, #tpu.memory_space<vmem>>) attributes {dimension_semantics = [#tpu.dimension_semantics<parallel>], iteration_bounds = array<i64: 1>, scalar_prefetch = 0 : i64, scratch_operands = 0 : i64, tpu.core_type = #tpu.core_type<tc>, window_params = [{transform_indices = @transform_0, window_bounds = array<i64: 512, 36>}, {pipeline_mode = #tpu.pipeline_mode<synchronous>, transform_indices = @transform_1, window_bounds = array<i64: 36, 256>}, {pipeline_mode = #tpu.pipeline_mode<synchronous>, transform_indices = @transform_2, window_bounds = array<i64: 1, 256>}, {pipeline_mode = #tpu.pipeline_mode<synchronous>, transform_indices = @transform_3, window_bounds = array<i64: 256, 128>}, {pipeline_mode = #tpu.pipeline_mode<synchronous>, transform_indices = @transform_4, window_bounds = array<i64: 1, 128>}, {transform_indices = @transform_5, window_bounds = array<i64: 2, 128>}]} {
    %c0 = arith.constant 0 : index
    %c0_0 = arith.constant 0 : index
    %0 = vector.load %arg1[%c0, %c0_0] : memref<512x36xbf16, #tpu.memory_space<vmem>>, vector<512x36xbf16>
    %c0_1 = arith.constant 0 : index
    %c0_2 = arith.constant 0 : index
    %1 = vector.load %arg2[%c0_1, %c0_2] : memref<36x256xbf16, #tpu.memory_space<vmem>>, vector<36x256xbf16>
    %cst = arith.constant dense<0.000000e+00> : vector<512x256xf32>
    %2 = tpu.matmul %0, %1, %cst {dimension_numbers = #tpu.dot_dimension_numbers<[1], [0], [0], [1], [0, 0, 1, 1], [], []>} : vector<512x36xbf16>, vector<36x256xbf16>, vector<512x256xf32> -> vector<512x256xf32>
    %c0_3 = arith.constant 0 : index
    %c0_4 = arith.constant 0 : index
    %3 = vector.load %arg3[%c0_3, %c0_4] : memref<1x256xf32, #tpu.memory_space<vmem>>, vector<1x256xf32>
    %4 = vector.broadcast %3 : vector<1x256xf32> to vector<512x256xf32>
    %5 = arith.addf %2, %4 : vector<512x256xf32>
    %cst_5 = arith.constant 0.000000e+00 : f32
    %6 = vector.broadcast %cst_5 : f32 to vector<512x256xf32>
    %7 = arith.maximumf %5, %6 : vector<512x256xf32>
    %8 = vector.shape_cast %7 : vector<512x256xf32> to vector<2x256x256xf32>
    %cst_6 = arith.constant dense<0.000000e+00> : vector<2x256xf32>
    %9 = vector.multi_reduction <add>, %8, %cst_6 [1] : vector<2x256x256xf32> to vector<2x256xf32>
    %cst_7 = arith.constant 3.906250e-03 : f32
    %10 = vector.broadcast %cst_7 : f32 to vector<2x256xf32>
    %11 = arith.mulf %9, %10 : vector<2x256xf32>
    %c0_8 = arith.constant 0 : index
    %c0_9 = arith.constant 0 : index
    %12 = vector.load %arg4[%c0_8, %c0_9] : memref<256x128xf32, #tpu.memory_space<vmem>>, vector<256x128xf32>
    %cst_10 = arith.constant dense<0.000000e+00> : vector<2x128xf32>
    %13 = tpu.matmul %11, %12, %cst_10 {dimension_numbers = #tpu.dot_dimension_numbers<[1], [0], [0], [1], [0, 0, 1, 1], [], []>} : vector<2x256xf32>, vector<256x128xf32>, vector<2x128xf32> -> vector<2x128xf32>
    %c0_11 = arith.constant 0 : index
    %c0_12 = arith.constant 0 : index
    %14 = vector.load %arg5[%c0_11, %c0_12] : memref<1x128xf32, #tpu.memory_space<vmem>>, vector<1x128xf32>
    %15 = vector.broadcast %14 : vector<1x128xf32> to vector<2x128xf32>
    %16 = arith.addf %13, %15 : vector<2x128xf32>
    %c0_13 = arith.constant 0 : index
    %c0_14 = arith.constant 0 : index
    %17 = vector.load %arg6[%c0_13, %c0_14] : memref<2x128xf32, #tpu.memory_space<vmem>>, vector<2x128xf32>
    tpu.vector_store %arg6[%c0_13, %c0_14], %16 {strides = array<i32>} : memref<2x128xf32, #tpu.memory_space<vmem>>, vector<2x128xf32>,
    return
  }
  func.func @transform_0(%arg0: i32) -> (i32, i32) {
    %c0_i32 = arith.constant 0 : i32
    %c0_i32_0 = arith.constant 0 : i32
    return %arg0, %c0_i32 : i32, i32
  }
  func.func @transform_1(%arg0: i32) -> (i32, i32) {
    %c0_i32 = arith.constant 0 : i32
    %c0_i32_0 = arith.constant 0 : i32
    %c0_i32_1 = arith.constant 0 : i32
    return %c0_i32, %c0_i32_0 : i32, i32
  }
  func.func @transform_2(%arg0: i32) -> (i32, i32) {
    %c0_i32 = arith.constant 0 : i32
    %c0_i32_0 = arith.constant 0 : i32
    %c0_i32_1 = arith.constant 0 : i32
    return %c0_i32, %c0_i32_0 : i32, i32
  }
  func.func @transform_3(%arg0: i32) -> (i32, i32) {
    %c0_i32 = arith.constant 0 : i32
    %c0_i32_0 = arith.constant 0 : i32
    %c0_i32_1 = arith.constant 0 : i32
    return %c0_i32, %c0_i32_0 : i32, i32
  }
  func.func @transform_4(%arg0: i32) -> (i32, i32) {
    %c0_i32 = arith.constant 0 : i32
    %c0_i32_0 = arith.constant 0 : i32
    %c0_i32_1 = arith.constant 0 : i32
    return %c0_i32, %c0_i32_0 : i32, i32
  }
  func.func @transform_5(%arg0: i32) -> (i32, i32) {
    %c0_i32 = arith.constant 0 : i32
    %c0_i32_0 = arith.constant 0 : i32
    return %arg0, %c0_i32 : i32, i32
  }
}

</mosaic_0001>

<llo_original>
// kernel: shape_branch_se_apply.1
$region0: #{shape_branch_se_apply.1}
  #allocation0 [shape = 'u32[]', space=smem, size = 0x4, offset = 0x4, fixed_abs, tag = 'smem constant byte address 0x4 - core index']
  #allocation1 [shape = 'u32[72,128]{1,0:T(1,128)}', space=vmem, size = 0x9000, scoped, tag = 'internal scratch']
  %s0 = inlined_call_operand.vmem [shape: bf16[512,36], index: 0, kind: input, shape index: {}]
  %s1 = inlined_call_operand.vmem [shape: bf16[36,256], index: 1, kind: input, shape index: {}]
  %s2 = inlined_call_operand.vmem [shape: f32[1,256], index: 2, kind: input, shape index: {}]
  %s3 = inlined_call_operand.vmem [shape: f32[256,128], index: 3, kind: input, shape index: {}]
  %s4 = inlined_call_operand.vmem [shape: f32[1,128], index: 4, kind: input, shape index: {}]
  %s5 = inlined_call_operand.hbm [shape: f32[2,128], index: 5, kind: output, shape index: {}]
  %s6 = sld [smem:[#allocation0]]
  $region30: #{shape_branch_se_apply.1} parent=0
    _
  %s8 = ssub.s32 1, %s6
  %s9 = scalar_select 0, %s8, %s6
  $region1: #{shape_branch_se_apply.1} parent=0
    #allocation2 [shape = 'u8[1024]{0}', space=vmem, size = 0x400, scoped, tag = 'output window, operand 0, single buffered']
    #allocation3 [shape = 's32[1]{0}', space=sflag, size = 0x4, scoped, tag = 'scoped memory for shape_branch_se_apply.1']
    %10 = vsyncpa [#allocation3], 0
    // Predicated region
    $region2: #{shape_branch_se_apply.1} parent=1 // pred_check
      _
    $region3: #{shape_branch_se_apply.1} parent=1 // pred_check_branch
      %12 = sbr.rel (0) target = $region5
    $region4: #{shape_branch_se_apply.1} parent=1 // pred_region
      _
    $region5: #{shape_branch_se_apply.1} parent=1 // pred_fallthru
      _
    // Predicated region
    $region6: #{shape_branch_se_apply.1} parent=1 // pred_check
      _
    $region7: #{shape_branch_se_apply.1} parent=1 // pred_check_branch
      %14 = sbr.rel (0) target = $region9
    $region8: #{shape_branch_se_apply.1} parent=1 // pred_region
      _
    $region9: #{shape_branch_se_apply.1} parent=1 // pred_fallthru
      _
    // Predicated region
    $region10: #{shape_branch_se_apply.1} parent=1 // pred_check
      _
    $region11: #{shape_branch_se_apply.1} parent=1 // pred_check_branch
      %16 = sbr.rel (0) target = $region13
    $region12: #{shape_branch_se_apply.1} parent=1 // pred_region
      _
    $region13: #{shape_branch_se_apply.1} parent=1 // pred_fallthru
      _
    // Predicated region
    $region14: #{shape_branch_se_apply.1} parent=1 // pred_check
      _
    $region15: #{shape_branch_se_apply.1} parent=1 // pred_check_branch
      %18 = sbr.rel (0) target = $region17
    $region16: #{shape_branch_se_apply.1} parent=1 // pred_region
      _
    $region17: #{shape_branch_se_apply.1} parent=1 // pred_fallthru
      _
    // Predicated region
    $region18: #{shape_branch_se_apply.1} parent=1 // pred_check
      _
    $region19: #{shape_branch_se_apply.1} parent=1 // pred_check_branch
      %20 = sbr.rel (0) target = $region21
    $region20: #{shape_branch_se_apply.1} parent=1 // pred_region
      _
    $region21: #{shape_branch_se_apply.1} parent=1 // pred_fallthru
      _
    %v22 = vld [vmem:[%s0] sm:$0xf]
    %v23 = vld [vmem:[%s0 + $0x4] sm:$0xf]
    %v24 = vld [vmem:[%s0 + $0x8] sm:$0xf]
    %v25 = vld [vmem:[%s0 + $0xc] sm:$0xf]
    %v26 = vld [vmem:[%s0 + $0x10] sm:$0xf]
    %v27 = vld [vmem:[%s0 + $0x14] sm:$0xf]
    %v28 = vld [vmem:[%s0 + $0x18] sm:$0xf]
    %v29 = vld [vmem:[%s0 + $0x1c] sm:$0xf]
    %v30 = vld [vmem:[%s0 + $0x20] sm:$0xf]
    %v31 = vld [vmem:[%s0 + $0x24] sm:$0xf]
    %v32 = vld [vmem:[%s0 + $0x28] sm:$0xf]
    %v33 = vld [vmem:[%s0 + $0x2c] sm:$0xf]
    %v34 = vld [vmem:[%s0 + $0x30] sm:$0xf]
    %v35 = vld [vmem:[%s0 + $0x34] sm:$0xf]
    %v36 = vld [vmem:[%s0 + $0x38] sm:$0xf]
    %v37 = vld [vmem:[%s0 + $0x3c] sm:$0xf]
    %v38 = vld [vmem:[%s0 + $0x40] sm:$0xf]
    %v39 = vld [vmem:[%s0 + $0x44] sm:$0xf]
    %v40 = vld [vmem:[%s0 + $0x48] sm:$0xf]
    %v41 = vld [vmem:[%s0 + $0x4c] sm:$0xf]
    %v42 = vld [vmem:[%s0 + $0x50] sm:$0xf]
    %v43 = vld [vmem:[%s0 + $0x54] sm:$0xf]
    %v44 = vld [vmem:[%s0 + $0x58] sm:$0xf]
    %v45 = vld [vmem:[%s0 + $0x5c] sm:$0xf]
    %v46 = vld [vmem:[%s0 + $0x60] sm:$0xf]
    %v47 = vld [vmem:[%s0 + $0x64] sm:$0xf]
    %v48 = vld [vmem:[%s0 + $0x68] sm:$0xf]
    %v49 = vld [vmem:[%s0 + $0x6c] sm:$0xf]
    %v50 = vld [vmem:[%s0 + $0x70] sm:$0xf]
    %v51 = vld [vmem:[%s0 + $0x74] sm:$0xf]
    %v52 = vld [vmem:[%s0 + $0x78] sm:$0xf]
    %v53 = vld [vmem:[%s0 + $0x7c] sm:$0xf]
    %v54 = vld [vmem:[%s0 + $0x80] sm:$0xf]
    %v55 = vld [vmem:[%s0 + $0x84] sm:$0xf]
    %v56 = vld [vmem:[%s0 + $0x88] sm:$0xf]
    %v57 = vld [vmem:[%s0 + $0x8c] sm:$0xf]
    %v58 = vld [vmem:[%s0 + $0x90] sm:$0xf]
    %v59 = vld [vmem:[%s0 + $0x94] sm:$0xf]
    %v60 = vld [vmem:[%s0 + $0x98] sm:$0xf]
    %v61 = vld [vmem:[%s0 + $0x9c] sm:$0xf]
    %v62 = vld [vmem:[%s0 + $0xa0] sm:$0xf]
    %v63 = vld [vmem:[%s0 + $0xa4] sm:$0xf]
    %v64 = vld [vmem:[%s0 + $0xa8] sm:$0xf]
    %v65 = vld [vmem:[%s0 + $0xac] sm:$0xf]
    %v66 = vld [vmem:[%s0 + $0xb0] sm:$0xf]
    %v67 = vld [vmem:[%s0 + $0xb4] sm:$0xf]
    %v68 = vld [vmem:[%s0 + $0xb8] sm:$0xf]
    %v69 = vld [vmem:[%s0 + $0xbc] sm:$0xf]
    %v70 = vld [vmem:[%s0 + $0xc0] sm:$0xf]
    %v71 = vld [vmem:[%s0 + $0xc4] sm:$0xf]
    %v72 = vld [vmem:[%s0 + $0xc8] sm:$0xf]
    %v73 = vld [vmem:[%s0 + $0xcc] sm:$0xf]
    %v74 = vld [vmem:[%s0 + $0xd0] sm:$0xf]
    %v75 = vld [vmem:[%s0 + $0xd4] sm:$0xf]
    %v76 = vld [vmem:[%s0 + $0xd8] sm:$0xf]
    %v77 = vld [vmem:[%s0 + $0xdc] sm:$0xf]
    %v78 = vld [vmem:[%s0 + $0xe0] sm:$0xf]
    %v79 = vld [vmem:[%s0 + $0xe4] sm:$0xf]
    %v80 = vld [vmem:[%s0 + $0xe8] sm:$0xf]
    %v81 = vld [vmem:[%s0 + $0xec] sm:$0xf]
    %v82 = vld [vmem:[%s0 + $0xf0] sm:$0xf]
    %v83 = vld [vmem:[%s0 + $0xf4] sm:$0xf]
    %v84 = vld [vmem:[%s0 + $0xf8] sm:$0xf]
    %v85 = vld [vmem:[%s0 + $0xfc] sm:$0xf]
    %v86 = vld [vmem:[%s1] sm:$0xff]
    %v87 = vld [vmem:[%s1 + $0x8] sm:$0xff]
    %v88 = vld [vmem:[%s1 + $0x10] sm:$0xff]
    %v89 = vld [vmem:[%s1 + $0x18] sm:$0xff]
    %v90 = vld [vmem:[%s1 + $0x20] sm:$0x33]
    %v91 = vld [vmem:[%s2] sm:$0x3]
    %v93 = vperm.slane %v91, 0
    %v94 = vperm.slane %v91, 1
    %v161 = vunpack.c.l.b16 %v22
    %v162 = vunpack.c.l.b16 %v23
    %v163 = vunpack.c.l.b16 %v24
    %v164 = vunpack.c.l.b16 %v25
    %v165 = vunpack.c.l.b16 %v26
    %v166 = vunpack.c.l.b16 %v27
    %v167 = vunpack.c.l.b16 %v28
    %v168 = vunpack.c.l.b16 %v29
    %v169 = vunpack.c.l.b16 %v30
    %v170 = vunpack.c.l.b16 %v31
    %v171 = vunpack.c.l.b16 %v32
    %v172 = vunpack.c.l.b16 %v33
    %v173 = vunpack.c.l.b16 %v34
    %v174 = vunpack.c.l.b16 %v35
    %v175 = vunpack.c.l.b16 %v36
    %v176 = vunpack.c.l.b16 %v37
    %v177 = vunpack.c.l.b16 %v38
    %v178 = vunpack.c.l.b16 %v39
    %v179 = vunpack.c.l.b16 %v40
    %v180 = vunpack.c.l.b16 %v41
    %v181 = vunpack.c.l.b16 %v42
    %v182 = vunpack.c.l.b16 %v43
    %v183 = vunpack.c.l.b16 %v44
    %v184 = vunpack.c.l.b16 %v45
    %v185 = vunpack.c.l.b16 %v46
    %v186 = vunpack.c.l.b16 %v47
    %v187 = vunpack.c.l.b16 %v48
    %v188 = vunpack.c.l.b16 %v49
    %v189 = vunpack.c.l.b16 %v50
    %v190 = vunpack.c.l.b16 %v51
    %v191 = vunpack.c.l.b16 %v52
    %v192 = vunpack.c.l.b16 %v53
    %v193 = vunpack.c.l.b16 %v54
    %v194 = vunpack.c.l.b16 %v55
    %v195 = vunpack.c.l.b16 %v56
    %v196 = vunpack.c.l.b16 %v57
    %v197 = vunpack.c.l.b16 %v58
    %v198 = vunpack.c.l.b16 %v59
    %v199 = vunpack.c.l.b16 %v60
    %v200 = vunpack.c.l.b16 %v61
    %v201 = vunpack.c.l.b16 %v62
    %v202 = vunpack.c.l.b16 %v63
    %v203 = vunpack.c.l.b16 %v64
    %v204 = vunpack.c.l.b16 %v65
    %v205 = vunpack.c.l.b16 %v66
    %v206 = vunpack.c.l.b16 %v67
    %v207 = vunpack.c.l.b16 %v68
    %v208 = vunpack.c.l.b16 %v69
    %v209 = vunpack.c.l.b16 %v70
    %v210 = vunpack.c.l.b16 %v71
    %v211 = vunpack.c.l.b16 %v72
    %v212 = vunpack.c.l.b16 %v73
    %v213 = vunpack.c.l.b16 %v74
    %v214 = vunpack.c.l.b16 %v75
    %v215 = vunpack.c.l.b16 %v76
    %v216 = vunpack.c.l.b16 %v77
    %v217 = vunpack.c.l.b16 %v78
    %v218 = vunpack.c.l.b16 %v79
    %v219 = vunpack.c.l.b16 %v80
    %v220 = vunpack.c.l.b16 %v81
    %v221 = vunpack.c.l.b16 %v82
    %v222 = vunpack.c.l.b16 %v83
    %v223 = vunpack.c.l.b16 %v84
    %v224 = vunpack.c.l.b16 %v85
    %v225 = vpack.c.b16 %v162, %v161
    %v226 = vpack.c.b16 %v164, %v163
    %v227 = vpack.c.b16 %v166, %v165
    %v228 = vpack.c.b16 %v168, %v167
    %v229 = vpack.c.b16 %v170, %v169
    %v230 = vpack.c.b16 %v172, %v171
    %v231 = vpack.c.b16 %v174, %v173
    %v232 = vpack.c.b16 %v176, %v175
    %v233 = vpack.c.b16 %v178, %v177
    %v234 = vpack.c.b16 %v180, %v179
    %v235 = vpack.c.b16 %v182, %v181
    %v236 = vpack.c.b16 %v184, %v183
    %v237 = vpack.c.b16 %v186, %v185
    %v238 = vpack.c.b16 %v188, %v187
    %v239 = vpack.c.b16 %v190, %v189
    %v240 = vpack.c.b16 %v192, %v191
    %v241 = vpack.c.b16 %v194, %v193
    %v242 = vpack.c.b16 %v196, %v195
    %v243 = vpack.c.b16 %v198, %v197
    %v244 = vpack.c.b16 %v200, %v199
    %v245 = vpack.c.b16 %v202, %v201
    %v246 = vpack.c.b16 %v204, %v203
    %v247 = vpack.c.b16 %v206, %v205
    %v248 = vpack.c.b16 %v208, %v207
    %v249 = vpack.c.b16 %v210, %v209
    %v250 = vpack.c.b16 %v212, %v211
    %v251 = vpack.c.b16 %v214, %v213
    %v252 = vpack.c.b16 %v216, %v215
    %v253 = vpack.c.b16 %v218, %v217
    %v254 = vpack.c.b16 %v220, %v219
    %v255 = vpack.c.b16 %v222, %v221
    %v256 = vpack.c.b16 %v224, %v223
    %v262 = vunpack.c.l.b16 %v86
    %v263 = vunpack.c.h.b16 %v86
    %v264 = vunpack.c.l.b16 %v87
    %v265 = vunpack.c.h.b16 %v87
    %v266 = vunpack.c.l.b16 %v88
    %v267 = vunpack.c.h.b16 %v88
    %v268 = vunpack.c.l.b16 %v89
    %v269 = vunpack.c.h.b16 %v89
    %v270 = vunpack.c.l.b16 %v90
    %v271 = vunpack.c.h.b16 %v90
    %v272 = vpack.c.b16 %v264, %v262
    %v273 = vpack.c.b16 %v265, %v263
    %v274 = vpack.c.b16 %v268, %v266
    %v275 = vpack.c.b16 %v269, %v267
    %v276 = vpack.c.b16 %v270, %v270
    %v277 = vpack.c.b16 %v271, %v271
    %vm282 = vcmask 293888
    %v284 = vsel %vm282, %v225, 0
    %v287 = vsel %vm282, %v226, 0
    %v290 = vsel %vm282, %v227, 0
    %v293 = vsel %vm282, %v228, 0
    %v296 = vsel %vm282, %v229, 0
    %v299 = vsel %vm282, %v230, 0
    %v302 = vsel %vm282, %v231, 0
    %v305 = vsel %vm282, %v232, 0
    %v308 = vsel %vm282, %v233, 0
    %v311 = vsel %vm282, %v234, 0
    %v314 = vsel %vm282, %v235, 0
    %v317 = vsel %vm282, %v236, 0
    %v320 = vsel %vm282, %v237, 0
    %v323 = vsel %vm282, %v238, 0
    %v326 = vsel %vm282, %v239, 0
    %v329 = vsel %vm282, %v240, 0
    %v332 = vsel %vm282, %v241, 0
    %v335 = vsel %vm282, %v242, 0
    %v338 = vsel %vm282, %v243, 0
    %v341 = vsel %vm282, %v244, 0
    %v344 = vsel %vm282, %v245, 0
    %v347 = vsel %vm282, %v246, 0
    %v350 = vsel %vm282, %v247, 0
    %v353 = vsel %vm282, %v248, 0
    %v356 = vsel %vm282, %v249, 0
    %v359 = vsel %vm282, %v250, 0
    %v362 = vsel %vm282, %v251, 0
    %v365 = vsel %vm282, %v252, 0
    %v368 = vsel %vm282, %v253, 0
    %v371 = vsel %vm282, %v254, 0
    %v374 = vsel %vm282, %v255, 0
    %v377 = vsel %vm282, %v256, 0
    %vm379 = vcmask 1041408
    %v381 = vsel %vm379, %v276, 0
    %v384 = vsel %vm379, %v277, 0
    %386 = vmatpush.bf16.msra.mxu0 0
    %387 = vmatpush.bf16.msra.mxu0 0
    %388 = vmatpush.bf16.msra.mxu0 0
    %389 = vmatpush.bf16.msra.mxu0 0
    %390 = vmatpush.bf16.msra.mxu0 0
    %391 = vmatpush.bf16.msra.mxu0 %v381
    %392 = vmatpush.bf16.msra.mxu0 %v274
    %393 = vmatpush.bf16.msra.mxu0 %v272
    %394 = vmatmul.bf16.gmra.mxu0 %v284
    %v395 = vpop.f32.mrf.mxu0
    %v396 = vadd.f32 %v93, %v395
    %v397 = vpop.f32.mrf.mxu0
    %v398 = vadd.f32 %v93, %v397
    %399 = vmatmul.bf16.gmra.mxu0 %v287
    %v400 = vpop.f32.mrf.mxu0
    %v401 = vadd.f32 %v93, %v400
    %v402 = vpop.f32.mrf.mxu0
    %v403 = vadd.f32 %v93, %v402
    %404 = vmatmul.bf16.gmra.mxu0 %v290
    %v405 = vpop.f32.mrf.mxu0
    %v406 = vadd.f32 %v93, %v405
    %v407 = vpop.f32.mrf.mxu0
    %v408 = vadd.f32 %v93, %v407
    %409 = vmatmul.bf16.gmra.mxu0 %v293
    %v410 = vpop.f32.mrf.mxu0
    %v411 = vadd.f32 %v93, %v410
    %v412 = vpop.f32.mrf.mxu0
    %v413 = vadd.f32 %v93, %v412
    %414 = vmatmul.bf16.gmra.mxu0 %v296
    %v415 = vpop.f32.mrf.mxu0
    %v416 = vadd.f32 %v93, %v415
    %v417 = vpop.f32.mrf.mxu0
    %v418 = vadd.f32 %v93, %v417
    %419 = vmatmul.bf16.gmra.mxu0 %v299
    %v420 = vpop.f32.mrf.mxu0
    %v421 = vadd.f32 %v93, %v420
    %v422 = vpop.f32.mrf.mxu0
    %v423 = vadd.f32 %v93, %v422
    %424 = vmatmul.bf16.gmra.mxu0 %v302
    %v425 = vpop.f32.mrf.mxu0
    %v426 = vadd.f32 %v93, %v425
    %v427 = vpop.f32.mrf.mxu0
    %v428 = vadd.f32 %v93, %v427
    %429 = vmatmul.bf16.gmra.mxu0 %v305
    %v430 = vpop.f32.mrf.mxu0
    %v431 = vadd.f32 %v93, %v430
    %v432 = vpop.f32.mrf.mxu0
    %v433 = vadd.f32 %v93, %v432
    %434 = vmatmul.bf16.gmra.mxu0 %v308
    %v435 = vpop.f32.mrf.mxu0
    %v436 = vadd.f32 %v93, %v435
    %v437 = vpop.f32.mrf.mxu0
    %v438 = vadd.f32 %v93, %v437
    %439 = vmatmul.bf16.gmra.mxu0 %v311
    %v440 = vpop.f32.mrf.mxu0
    %v441 = vadd.f32 %v93, %v440
    %v442 = vpop.f32.mrf.mxu0
    %v443 = vadd.f32 %v93, %v442
    %444 = vmatmul.bf16.gmra.mxu0 %v314
    %v445 = vpop.f32.mrf.mxu0
    %v446 = vadd.f32 %v93, %v445
    %v447 = vpop.f32.mrf.mxu0
    %v448 = vadd.f32 %v93, %v447
    %449 = vmatmul.bf16.gmra.mxu0 %v317
    %v450 = vpop.f32.mrf.mxu0
    %v451 = vadd.f32 %v93, %v450
    %v452 = vpop.f32.mrf.mxu0
    %v453 = vadd.f32 %v93, %v452
    %454 = vmatmul.bf16.gmra.mxu0 %v320
    %v455 = vpop.f32.mrf.mxu0
    %v456 = vadd.f32 %v93, %v455
    %v457 = vpop.f32.mrf.mxu0
    %v458 = vadd.f32 %v93, %v457
    %459 = vmatmul.bf16.gmra.mxu0 %v323
    %v460 = vpop.f32.mrf.mxu0
    %v461 = vadd.f32 %v93, %v460
    %v462 = vpop.f32.mrf.mxu0
    %v463 = vadd.f32 %v93, %v462
    %464 = vmatmul.bf16.gmra.mxu0 %v326
    %v465 = vpop.f32.mrf.mxu0
    %v466 = vadd.f32 %v93, %v465
    %v467 = vpop.f32.mrf.mxu0
    %v468 = vadd.f32 %v93, %v467
    %469 = vmatmul.bf16.gmra.mxu0 %v329
    %v470 = vpop.f32.mrf.mxu0
    %v471 = vadd.f32 %v93, %v470
    %v472 = vpop.f32.mrf.mxu0
    %v473 = vadd.f32 %v93, %v472
    %474 = vmatmul.bf16.gmra.mxu0 %v332
    %v475 = vpop.f32.mrf.mxu0
    %v476 = vadd.f32 %v93, %v475
    %v477 = vpop.f32.mrf.mxu0
    %v478 = vadd.f32 %v93, %v477
    %479 = vmatmul.bf16.gmra.mxu0 %v335
    %v480 = vpop.f32.mrf.mxu0
    %v481 = vadd.f32 %v93, %v480
    %v482 = vpop.f32.mrf.mxu0
    %v483 = vadd.f32 %v93, %v482
    %484 = vmatmul.bf16.gmra.mxu0 %v338
    %v485 = vpop.f32.mrf.mxu0
    %v486 = vadd.f32 %v93, %v485
    %v487 = vpop.f32.mrf.mxu0
    %v488 = vadd.f32 %v93, %v487
    %489 = vmatmul.bf16.gmra.mxu0 %v341
    %v490 = vpop.f32.mrf.mxu0
    %v491 = vadd.f32 %v93, %v490
    %v492 = vpop.f32.mrf.mxu0
    %v493 = vadd.f32 %v93, %v492
    %494 = vmatmul.bf16.gmra.mxu0 %v344
    %v495 = vpop.f32.mrf.mxu0
    %v496 = vadd.f32 %v93, %v495
    %v497 = vpop.f32.mrf.mxu0
    %v498 = vadd.f32 %v93, %v497
    %499 = vmatmul.bf16.gmra.mxu0 %v347
    %v500 = vpop.f32.mrf.mxu0
    %v501 = vadd.f32 %v93, %v500
    %v502 = vpop.f32.mrf.mxu0
    %v503 = vadd.f32 %v93, %v502
    %504 = vmatmul.bf16.gmra.mxu0 %v350
    %v505 = vpop.f32.mrf.mxu0
    %v506 = vadd.f32 %v93, %v505
    %v507 = vpop.f32.mrf.mxu0
    %v508 = vadd.f32 %v93, %v507
    %509 = vmatmul.bf16.gmra.mxu0 %v353
    %v510 = vpop.f32.mrf.mxu0
    %v511 = vadd.f32 %v93, %v510
    %v512 = vpop.f32.mrf.mxu0
    %v513 = vadd.f32 %v93, %v512
    %514 = vmatmul.bf16.gmra.mxu0 %v356
    %v515 = vpop.f32.mrf.mxu0
    %v516 = vadd.f32 %v93, %v515
    %v517 = vpop.f32.mrf.mxu0
    %v518 = vadd.f32 %v93, %v517
    %519 = vmatmul.bf16.gmra.mxu0 %v359
    %v520 = vpop.f32.mrf.mxu0
    %v521 = vadd.f32 %v93, %v520
    %v522 = vpop.f32.mrf.mxu0
    %v523 = vadd.f32 %v93, %v522
    %524 = vmatmul.bf16.gmra.mxu0 %v362
    %v525 = vpop.f32.mrf.mxu0
    %v526 = vadd.f32 %v93, %v525
    %v527 = vpop.f32.mrf.mxu0
    %v528 = vadd.f32 %v93, %v527
    %529 = vmatmul.bf16.gmra.mxu0 %v365
    %v530 = vpop.f32.mrf.mxu0
    %v531 = vadd.f32 %v93, %v530
    %v532 = vpop.f32.mrf.mxu0
    %v533 = vadd.f32 %v93, %v532
    %534 = vmatmul.bf16.gmra.mxu0 %v368
    %v535 = vpop.f32.mrf.mxu0
    %v536 = vadd.f32 %v93, %v535
    %v537 = vpop.f32.mrf.mxu0
    %v538 = vadd.f32 %v93, %v537
    %539 = vmatmul.bf16.gmra.mxu0 %v371
    %v540 = vpop.f32.mrf.mxu0
    %v541 = vadd.f32 %v93, %v540
    %v542 = vpop.f32.mrf.mxu0
    %v543 = vadd.f32 %v93, %v542
    %544 = vmatmul.bf16.gmra.mxu0 %v374
    %v545 = vpop.f32.mrf.mxu0
    %v546 = vadd.f32 %v93, %v545
    %v547 = vpop.f32.mrf.mxu0
    %v548 = vadd.f32 %v93, %v547
    %549 = vmatmul.bf16.gmra.mxu0 %v377
    %v550 = vpop.f32.mrf.mxu0
    %v551 = vadd.f32 %v93, %v550
    %v552 = vpop.f32.mrf.mxu0
    %v553 = vadd.f32 %v93, %v552
    %554 = vdwg.mxu0
    %555 = vmatpush.bf16.msra.mxu0 0
    %556 = vmatpush.bf16.msra.mxu0 0
    %557 = vmatpush.bf16.msra.mxu0 0
    %558 = vmatpush.bf16.msra.mxu0 0
    %559 = vmatpush.bf16.msra.mxu0 0
    %560 = vmatpush.bf16.msra.mxu0 %v384
    %561 = vmatpush.bf16.msra.mxu0 %v275
    %562 = vmatpush.bf16.msra.mxu0 %v273
    %563 = vmatmul.bf16.gmra.mxu0 %v284
    %v564 = vpop.f32.mrf.mxu0
    %v565 = vadd.f32 %v94, %v564
    %v566 = vpop.f32.mrf.mxu0
    %v567 = vadd.f32 %v94, %v566
    %568 = vmatmul.bf16.gmra.mxu0 %v287
    %v569 = vpop.f32.mrf.mxu0
    %v570 = vadd.f32 %v94, %v569
    %v571 = vpop.f32.mrf.mxu0
    %v572 = vadd.f32 %v94, %v571
    %573 = vmatmul.bf16.gmra.mxu0 %v290
    %v574 = vpop.f32.mrf.mxu0
    %v575 = vadd.f32 %v94, %v574
    %v576 = vpop.f32.mrf.mxu0
    %v577 = vadd.f32 %v94, %v576
    %578 = vmatmul.bf16.gmra.mxu0 %v293
    %v579 = vpop.f32.mrf.mxu0
    %v580 = vadd.f32 %v94, %v579
    %v581 = vpop.f32.mrf.mxu0
    %v582 = vadd.f32 %v94, %v581
    %583 = vmatmul.bf16.gmra.mxu0 %v296
    %v584 = vpop.f32.mrf.mxu0
    %v585 = vadd.f32 %v94, %v584
    %v586 = vpop.f32.mrf.mxu0
    %v587 = vadd.f32 %v94, %v586
    %588 = vmatmul.bf16.gmra.mxu0 %v299
    %v589 = vpop.f32.mrf.mxu0
    %v590 = vadd.f32 %v94, %v589
    %v591 = vpop.f32.mrf.mxu0
    %v592 = vadd.f32 %v94, %v591
    %593 = vmatmul.bf16.gmra.mxu0 %v302
    %v594 = vpop.f32.mrf.mxu0
    %v595 = vadd.f32 %v94, %v594
    %v596 = vpop.f32.mrf.mxu0
    %v597 = vadd.f32 %v94, %v596
    %598 = vmatmul.bf16.gmra.mxu0 %v305
    %v599 = vpop.f32.mrf.mxu0
    %v600 = vadd.f32 %v94, %v599
    %v601 = vpop.f32.mrf.mxu0
    %v602 = vadd.f32 %v94, %v601
    %603 = vmatmul.bf16.gmra.mxu0 %v308
    %v604 = vpop.f32.mrf.mxu0
    %v605 = vadd.f32 %v94, %v604
    %v606 = vpop.f32.mrf.mxu0
    %v607 = vadd.f32 %v94, %v606
    %608 = vmatmul.bf16.gmra.mxu0 %v311
    %v609 = vpop.f32.mrf.mxu0
    %v610 = vadd.f32 %v94, %v609
    %v611 = vpop.f32.mrf.mxu0
    %v612 = vadd.f32 %v94, %v611
    %613 = vmatmul.bf16.gmra.mxu0 %v314
    %v614 = vpop.f32.mrf.mxu0
    %v615 = vadd.f32 %v94, %v614
    %v616 = vpop.f32.mrf.mxu0
    %v617 = vadd.f32 %v94, %v616
    %618 = vmatmul.bf16.gmra.mxu0 %v317
    %v619 = vpop.f32.mrf.mxu0
    %v620 = vadd.f32 %v94, %v619
    %v621 = vpop.f32.mrf.mxu0
    %v622 = vadd.f32 %v94, %v621
    %623 = vmatmul.bf16.gmra.mxu0 %v320
    %v624 = vpop.f32.mrf.mxu0
    %v625 = vadd.f32 %v94, %v624
    %v626 = vpop.f32.mrf.mxu0
    %v627 = vadd.f32 %v94, %v626
    %628 = vmatmul.bf16.gmra.mxu0 %v323
    %v629 = vpop.f32.mrf.mxu0
    %v630 = vadd.f32 %v94, %v629
    %v631 = vpop.f32.mrf.mxu0
    %v632 = vadd.f32 %v94, %v631
    %633 = vmatmul.bf16.gmra.mxu0 %v326
    %v634 = vpop.f32.mrf.mxu0
    %v635 = vadd.f32 %v94, %v634
    %v636 = vpop.f32.mrf.mxu0
    %v637 = vadd.f32 %v94, %v636
    %638 = vmatmul.bf16.gmra.mxu0 %v329
    %v639 = vpop.f32.mrf.mxu0
    %v640 = vadd.f32 %v94, %v639
    %v641 = vpop.f32.mrf.mxu0
    %v642 = vadd.f32 %v94, %v641
    %643 = vmatmul.bf16.gmra.mxu0 %v332
    %v644 = vpop.f32.mrf.mxu0
    %v645 = vadd.f32 %v94, %v644
    %v646 = vpop.f32.mrf.mxu0
    %v647 = vadd.f32 %v94, %v646
    %648 = vmatmul.bf16.gmra.mxu0 %v335
    %v649 = vpop.f32.mrf.mxu0
    %v650 = vadd.f32 %v94, %v649
    %v651 = vpop.f32.mrf.mxu0
    %v652 = vadd.f32 %v94, %v651
    %653 = vmatmul.bf16.gmra.mxu0 %v338
    %v654 = vpop.f32.mrf.mxu0
    %v655 = vadd.f32 %v94, %v654
    %v656 = vpop.f32.mrf.mxu0
    %v657 = vadd.f32 %v94, %v656
    %658 = vmatmul.bf16.gmra.mxu0 %v341
    %v659 = vpop.f32.mrf.mxu0
    %v660 = vadd.f32 %v94, %v659
    %v661 = vpop.f32.mrf.mxu0
    %v662 = vadd.f32 %v94, %v661
    %663 = vmatmul.bf16.gmra.mxu0 %v344
    %v664 = vpop.f32.mrf.mxu0
    %v665 = vadd.f32 %v94, %v664
    %v666 = vpop.f32.mrf.mxu0
    %v667 = vadd.f32 %v94, %v666
    %668 = vmatmul.bf16.gmra.mxu0 %v347
    %v669 = vpop.f32.mrf.mxu0
    %v670 = vadd.f32 %v94, %v669
    %v671 = vpop.f32.mrf.mxu0
    %v672 = vadd.f32 %v94, %v671
    %673 = vmatmul.bf16.gmra.mxu0 %v350
    %v674 = vpop.f32.mrf.mxu0
    %v675 = vadd.f32 %v94, %v674
    %v676 = vpop.f32.mrf.mxu0
    %v677 = vadd.f32 %v94, %v676
    %678 = vmatmul.bf16.gmra.mxu0 %v353
    %v679 = vpop.f32.mrf.mxu0
    %v680 = vadd.f32 %v94, %v679
    %v681 = vpop.f32.mrf.mxu0
    %v682 = vadd.f32 %v94, %v681
    %683 = vmatmul.bf16.gmra.mxu0 %v356
    %v684 = vpop.f32.mrf.mxu0
    %v685 = vadd.f32 %v94, %v684
    %v686 = vpop.f32.mrf.mxu0
    %v687 = vadd.f32 %v94, %v686
    %688 = vmatmul.bf16.gmra.mxu0 %v359
    %v689 = vpop.f32.mrf.mxu0
    %v690 = vadd.f32 %v94, %v689
    %v691 = vpop.f32.mrf.mxu0
    %v692 = vadd.f32 %v94, %v691
    %693 = vmatmul.bf16.gmra.mxu0 %v362
    %v694 = vpop.f32.mrf.mxu0
    %v695 = vadd.f32 %v94, %v694
    %v696 = vpop.f32.mrf.mxu0
    %v697 = vadd.f32 %v94, %v696
    %698 = vmatmul.bf16.gmra.mxu0 %v365
    %v699 = vpop.f32.mrf.mxu0
    %v700 = vadd.f32 %v94, %v699
    %v701 = vpop.f32.mrf.mxu0
    %v702 = vadd.f32 %v94, %v701
    %703 = vmatmul.bf16.gmra.mxu0 %v368
    %v704 = vpop.f32.mrf.mxu0
    %v705 = vadd.f32 %v94, %v704
    %v706 = vpop.f32.mrf.mxu0
    %v707 = vadd.f32 %v94, %v706
    %708 = vmatmul.bf16.gmra.mxu0 %v371
    %v709 = vpop.f32.mrf.mxu0
    %v710 = vadd.f32 %v94, %v709
    %v711 = vpop.f32.mrf.mxu0
    %v712 = vadd.f32 %v94, %v711
    %713 = vmatmul.bf16.gmra.mxu0 %v374
    %v714 = vpop.f32.mrf.mxu0
    %v715 = vadd.f32 %v94, %v714
    %v716 = vpop.f32.mrf.mxu0
    %v717 = vadd.f32 %v94, %v716
    %718 = vmatmul.bf16.gmra.mxu0 %v377
    %v719 = vpop.f32.mrf.mxu0
    %v720 = vadd.f32 %v94, %v719
    %v721 = vpop.f32.mrf.mxu0
    %v722 = vadd.f32 %v94, %v721
    %723 = vdwg.mxu0
    %v724 = vmax.f32 %v396, 0.0
    %v725 = vmax.f32 %v565, 0.0
    %v726 = vmax.f32 %v398, 0.0
    %v727 = vmax.f32 %v567, 0.0
    %v728 = vmax.f32 %v401, 0.0
    %v729 = vmax.f32 %v570, 0.0
    %v730 = vmax.f32 %v403, 0.0
    %v731 = vmax.f32 %v572, 0.0
    %v732 = vmax.f32 %v406, 0.0
    %v733 = vmax.f32 %v575, 0.0
    %v734 = vmax.f32 %v408, 0.0
    %v735 = vmax.f32 %v577, 0.0
    %v736 = vmax.f32 %v411, 0.0
    %v737 = vmax.f32 %v580, 0.0
    %v738 = vmax.f32 %v413, 0.0
    %v739 = vmax.f32 %v582, 0.0
    %v740 = vmax.f32 %v416, 0.0
    %v741 = vmax.f32 %v585, 0.0
    %v742 = vmax.f32 %v418, 0.0
    %v743 = vmax.f32 %v587, 0.0
    %v744 = vmax.f32 %v421, 0.0
    %v745 = vmax.f32 %v590, 0.0
    %v746 = vmax.f32 %v423, 0.0
    %v747 = vmax.f32 %v592, 0.0
    %v748 = vmax.f32 %v426, 0.0
    %v749 = vmax.f32 %v595, 0.0
    %v750 = vmax.f32 %v428, 0.0
    %v751 = vmax.f32 %v597, 0.0
    %v752 = vmax.f32 %v431, 0.0
    %v753 = vmax.f32 %v600, 0.0
    %v754 = vmax.f32 %v433, 0.0
    %v755 = vmax.f32 %v602, 0.0
    %v756 = vmax.f32 %v436, 0.0
    %v757 = vmax.f32 %v605, 0.0
    %v758 = vmax.f32 %v438, 0.0
    %v759 = vmax.f32 %v607, 0.0
    %v760 = vmax.f32 %v441, 0.0
    %v761 = vmax.f32 %v610, 0.0
    %v762 = vmax.f32 %v443, 0.0
    %v763 = vmax.f32 %v612, 0.0
    %v764 = vmax.f32 %v446, 0.0
    %v765 = vmax.f32 %v615, 0.0
    %v766 = vmax.f32 %v448, 0.0
    %v767 = vmax.f32 %v617, 0.0
    %v768 = vmax.f32 %v451, 0.0
    %v769 = vmax.f32 %v620, 0.0
    %v770 = vmax.f32 %v453, 0.0
    %v771 = vmax.f32 %v622, 0.0
    %v772 = vmax.f32 %v456, 0.0
    %v773 = vmax.f32 %v625, 0.0
    %v774 = vmax.f32 %v458, 0.0
    %v775 = vmax.f32 %v627, 0.0
    %v776 = vmax.f32 %v461, 0.0
    %v777 = vmax.f32 %v630, 0.0
    %v778 = vmax.f32 %v463, 0.0
    %v779 = vmax.f32 %v632, 0.0
    %v780 = vmax.f32 %v466, 0.0
    %v781 = vmax.f32 %v635, 0.0
    %v782 = vmax.f32 %v468, 0.0
    %v783 = vmax.f32 %v637, 0.0
    %v784 = vmax.f32 %v471, 0.0
    %v785 = vmax.f32 %v640, 0.0
    %v786 = vmax.f32 %v473, 0.0
    %v787 = vmax.f32 %v642, 0.0
    %v788 = vmax.f32 %v476, 0.0
    %v789 = vmax.f32 %v645, 0.0
    %v790 = vmax.f32 %v478, 0.0
    %v791 = vmax.f32 %v647, 0.0
    %v792 = vmax.f32 %v481, 0.0
    %v793 = vmax.f32 %v650, 0.0
    %v794 = vmax.f32 %v483, 0.0
    %v795 = vmax.f32 %v652, 0.0
    %v796 = vmax.f32 %v486, 0.0
    %v797 = vmax.f32 %v655, 0.0
    %v798 = vmax.f32 %v488, 0.0
    %v799 = vmax.f32 %v657, 0.0
    %v800 = vmax.f32 %v491, 0.0
    %v801 = vmax.f32 %v660, 0.0
    %v802 = vmax.f32 %v493, 0.0
    %v803 = vmax.f32 %v662, 0.0
    %v804 = vmax.f32 %v496, 0.0
    %v805 = vmax.f32 %v665, 0.0
    %v806 = vmax.f32 %v498, 0.0
    %v807 = vmax.f32 %v667, 0.0
    %v808 = vmax.f32 %v501, 0.0
    %v809 = vmax.f32 %v670, 0.0
    %v810 = vmax.f32 %v503, 0.0
    %v811 = vmax.f32 %v672, 0.0
    %v812 = vmax.f32 %v506, 0.0
    %v813 = vmax.f32 %v675, 0.0
    %v814 = vmax.f32 %v508, 0.0
    %v815 = vmax.f32 %v677, 0.0
    %v816 = vmax.f32 %v511, 0.0
    %v817 = vmax.f32 %v680, 0.0
    %v818 = vmax.f32 %v513, 0.0
    %v819 = vmax.f32 %v682, 0.0
    %v820 = vmax.f32 %v516, 0.0
    %v821 = vmax.f32 %v685, 0.0
    %v822 = vmax.f32 %v518, 0.0
    %v823 = vmax.f32 %v687, 0.0
    %v824 = vmax.f32 %v521, 0.0
    %v825 = vmax.f32 %v690, 0.0
    %v826 = vmax.f32 %v523, 0.0
    %v827 = vmax.f32 %v692, 0.0
    %v828 = vmax.f32 %v526, 0.0
    %v829 = vmax.f32 %v695, 0.0
    %v830 = vmax.f32 %v528, 0.0
    %v831 = vmax.f32 %v697, 0.0
    %v832 = vmax.f32 %v531, 0.0
    %v833 = vmax.f32 %v700, 0.0
    %v834 = vmax.f32 %v533, 0.0
    %v835 = vmax.f32 %v702, 0.0
    %v836 = vmax.f32 %v536, 0.0
    %v837 = vmax.f32 %v705, 0.0
    %v838 = vmax.f32 %v538, 0.0
    %v839 = vmax.f32 %v707, 0.0
    %v840 = vmax.f32 %v541, 0.0
    %v841 = vmax.f32 %v710, 0.0
    %v842 = vmax.f32 %v543, 0.0
    %v843 = vmax.f32 %v712, 0.0
    %v844 = vmax.f32 %v546, 0.0
    %v845 = vmax.f32 %v715, 0.0
    %v846 = vmax.f32 %v548, 0.0
    %v847 = vmax.f32 %v717, 0.0
    %v848 = vmax.f32 %v551, 0.0
    %v849 = vmax.f32 %v720, 0.0
    %v850 = vmax.f32 %v553, 0.0
    %v851 = vmax.f32 %v722, 0.0
    %v852 = vadd.f32 %v724, %v726
    %v853 = vadd.f32 %v852, %v728
    %v854 = vadd.f32 %v853, %v730
    %v855 = vadd.f32 %v854, %v732
    %v856 = vadd.f32 %v855, %v734
    %v857 = vadd.f32 %v856, %v736
    %v858 = vadd.f32 %v857, %v738
    %v859 = vadd.f32 %v858, %v740
    %v860 = vadd.f32 %v859, %v742
    %v861 = vadd.f32 %v860, %v744
    %v862 = vadd.f32 %v861, %v746
    %v863 = vadd.f32 %v862, %v748
    %v864 = vadd.f32 %v863, %v750
    %v865 = vadd.f32 %v864, %v752
    %v866 = vadd.f32 %v865, %v754
    %v867 = vadd.f32 %v866, %v756
    %v868 = vadd.f32 %v867, %v758
    %v869 = vadd.f32 %v868, %v760
    %v870 = vadd.f32 %v869, %v762
    %v871 = vadd.f32 %v870, %v764
    %v872 = vadd.f32 %v871, %v766
    %v873 = vadd.f32 %v872, %v768
    %v874 = vadd.f32 %v873, %v770
    %v875 = vadd.f32 %v874, %v772
    %v876 = vadd.f32 %v875, %v774
    %v877 = vadd.f32 %v876, %v776
    %v878 = vadd.f32 %v877, %v778
    %v879 = vadd.f32 %v878, %v780
    %v880 = vadd.f32 %v879, %v782
    %v881 = vadd.f32 %v880, %v784
    %v882 = vadd.f32 %v881, %v786
    %v883 = vrot.slane %v882, 4
    %v884 = vadd.f32 %v882, %v883
    %v885 = vrot.slane %v884, 2
    %v886 = vadd.f32 %v884, %v885
    %v887 = vrot.slane %v886, 1
    %v888 = vadd.f32 %v886, %v887
    %v889 = vadd.f32 %v725, %v727
    %v890 = vadd.f32 %v889, %v729
    %v891 = vadd.f32 %v890, %v731
    %v892 = vadd.f32 %v891, %v733
    %v893 = vadd.f32 %v892, %v735
    %v894 = vadd.f32 %v893, %v737
    %v895 = vadd.f32 %v894, %v739
    %v896 = vadd.f32 %v895, %v741
    %v897 = vadd.f32 %v896, %v743
    %v898 = vadd.f32 %v897, %v745
    %v899 = vadd.f32 %v898, %v747
    %v900 = vadd.f32 %v899, %v749
    %v901 = vadd.f32 %v900, %v751
    %v902 = vadd.f32 %v901, %v753
    %v903 = vadd.f32 %v902, %v755
    %v904 = vadd.f32 %v903, %v757
    %v905 = vadd.f32 %v904, %v759
    %v906 = vadd.f32 %v905, %v761
    %v907 = vadd.f32 %v906, %v763
    %v908 = vadd.f32 %v907, %v765
    %v909 = vadd.f32 %v908, %v767
    %v910 = vadd.f32 %v909, %v769
    %v911 = vadd.f32 %v910, %v771
    %v912 = vadd.f32 %v911, %v773
    %v913 = vadd.f32 %v912, %v775
    %v914 = vadd.f32 %v913, %v777
    %v915 = vadd.f32 %v914, %v779
    %v916 = vadd.f32 %v915, %v781
    %v917 = vadd.f32 %v916, %v783
    %v918 = vadd.f32 %v917, %v785
    %v919 = vadd.f32 %v918, %v787
    %v920 = vrot.slane %v919, 4
    %v921 = vadd.f32 %v919, %v920
    %v922 = vrot.slane %v921, 2
    %v923 = vadd.f32 %v921, %v922
    %v924 = vrot.slane %v923, 1
    %v925 = vadd.f32 %v923, %v924
    %v926 = vadd.f32 %v788, %v790
    %v927 = vadd.f32 %v926, %v792
    %v928 = vadd.f32 %v927, %v794
    %v929 = vadd.f32 %v928, %v796
    %v930 = vadd.f32 %v929, %v798
    %v931 = vadd.f32 %v930, %v800
    %v932 = vadd.f32 %v931, %v802
    %v933 = vadd.f32 %v932, %v804
    %v934 = vadd.f32 %v933, %v806
    %v935 = vadd.f32 %v934, %v808
    %v936 = vadd.f32 %v935, %v810
    %v937 = vadd.f32 %v936, %v812
    %v938 = vadd.f32 %v937, %v814
    %v939 = vadd.f32 %v938, %v816
    %v940 = vadd.f32 %v939, %v818
    %v941 = vadd.f32 %v940, %v820
    %v942 = vadd.f32 %v941, %v822
    %v943 = vadd.f32 %v942, %v824
    %v944 = vadd.f32 %v943, %v826
    %v945 = vadd.f32 %v944, %v828
    %v946 = vadd.f32 %v945, %v830
    %v947 = vadd.f32 %v946, %v832
    %v948 = vadd.f32 %v947, %v834
    %v949 = vadd.f32 %v948, %v836
    %v950 = vadd.f32 %v949, %v838
    %v951 = vadd.f32 %v950, %v840
    %v952 = vadd.f32 %v951, %v842
    %v953 = vadd.f32 %v952, %v844
    %v954 = vadd.f32 %v953, %v846
    %v955 = vadd.f32 %v954, %v848
    %v956 = vadd.f32 %v955, %v850
    %v957 = vrot.slane %v956, 4
    %v958 = vadd.f32 %v956, %v957
    %v959 = vrot.slane %v958, 2
    %v960 = vadd.f32 %v958, %v959
    %v961 = vrot.slane %v960, 1
    %v962 = vadd.f32 %v960, %v961
    %v963 = vadd.f32 %v789, %v791
    %v964 = vadd.f32 %v963, %v793
    %v965 = vadd.f32 %v964, %v795
    %v966 = vadd.f32 %v965, %v797
    %v967 = vadd.f32 %v966, %v799
    %v968 = vadd.f32 %v967, %v801
    %v969 = vadd.f32 %v968, %v803
    %v970 = vadd.f32 %v969, %v805
    %v971 = vadd.f32 %v970, %v807
    %v972 = vadd.f32 %v971, %v809
    %v973 = vadd.f32 %v972, %v811
    %v974 = vadd.f32 %v973, %v813
    %v975 = vadd.f32 %v974, %v815
    %v976 = vadd.f32 %v975, %v817
    %v977 = vadd.f32 %v976, %v819
    %v978 = vadd.f32 %v977, %v821
    %v979 = vadd.f32 %v978, %v823
    %v980 = vadd.f32 %v979, %v825
    %v981 = vadd.f32 %v980, %v827
    %v982 = vadd.f32 %v981, %v829
    %v983 = vadd.f32 %v982, %v831
    %v984 = vadd.f32 %v983, %v833
    %v985 = vadd.f32 %v984, %v835
    %v986 = vadd.f32 %v985, %v837
    %v987 = vadd.f32 %v986, %v839
    %v988 = vadd.f32 %v987, %v841
    %v989 = vadd.f32 %v988, %v843
    %v990 = vadd.f32 %v989, %v845
    %v991 = vadd.f32 %v990, %v847
    %v992 = vadd.f32 %v991, %v849
    %v993 = vadd.f32 %v992, %v851
    %v994 = vrot.slane %v993, 4
    %v995 = vadd.f32 %v993, %v994
    %v996 = vrot.slane %v995, 2
    %v997 = vadd.f32 %v995, %v996
    %v998 = vrot.slane %v997, 1
    %v999 = vadd.f32 %v997, %v998
    %v1000 = vmul.f32 %v888, 0.00390625
    %v1001 = vmul.f32 %v925, 0.00390625
    %v1002 = vmul.f32 %v962, 0.00390625
    %v1003 = vmul.f32 %v999, 0.00390625
    %v1004 = vld [vmem:[%s3] sm:$0xff]
    %v1005 = vld [vmem:[%s3 + $0x8] sm:$0xff]
    %v1006 = vld [vmem:[%s3 + $0x10] sm:$0xff]
    %v1007 = vld [vmem:[%s3 + $0x18] sm:$0xff]
    %v1008 = vld [vmem:[%s3 + $0x20] sm:$0xff]
    %v1009 = vld [vmem:[%s3 + $0x28] sm:$0xff]
    %v1010 = vld [vmem:[%s3 + $0x30] sm:$0xff]
    %v1011 = vld [vmem:[%s3 + $0x38] sm:$0xff]
    %v1012 = vld [vmem:[%s3 + $0x40] sm:$0xff]
    %v1013 = vld [vmem:[%s3 + $0x48] sm:$0xff]
    %v1014 = vld [vmem:[%s3 + $0x50] sm:$0xff]
    %v1015 = vld [vmem:[%s3 + $0x58] sm:$0xff]
    %v1016 = vld [vmem:[%s3 + $0x60] sm:$0xff]
    %v1017 = vld [vmem:[%s3 + $0x68] sm:$0xff]
    %v1018 = vld [vmem:[%s3 + $0x70] sm:$0xff]
    %v1019 = vld [vmem:[%s3 + $0x78] sm:$0xff]
    %v1020 = vld [vmem:[%s3 + $0x80] sm:$0xff]
    %v1021 = vld [vmem:[%s3 + $0x88] sm:$0xff]
    %v1022 = vld [vmem:[%s3 + $0x90] sm:$0xff]
    %v1023 = vld [vmem:[%s3 + $0x98] sm:$0xff]
    %v1024 = vld [vmem:[%s3 + $0xa0] sm:$0xff]
    %v1025 = vld [vmem:[%s3 + $0xa8] sm:$0xff]
    %v1026 = vld [vmem:[%s3 + $0xb0] sm:$0xff]
    %v1027 = vld [vmem:[%s3 + $0xb8] sm:$0xff]
    %v1028 = vld [vmem:[%s3 + $0xc0] sm:$0xff]
    %v1029 = vld [vmem:[%s3 + $0xc8] sm:$0xff]
    %v1030 = vld [vmem:[%s3 + $0xd0] sm:$0xff]
    %v1031 = vld [vmem:[%s3 + $0xd8] sm:$0xff]
    %v1032 = vld [vmem:[%s3 + $0xe0] sm:$0xff]
    %v1033 = vld [vmem:[%s3 + $0xe8] sm:$0xff]
    %v1034 = vld [vmem:[%s3 + $0xf0] sm:$0xff]
    %v1035 = vld [vmem:[%s3 + $0xf8] sm:$0xff]
    %v1036 = vld [vmem:[%s4] sm:$0x1]
    %v1038 = vperm.slane %v1036, 0
    %vm1044 = vcmask 1041409
    %v1045 = vsel %vm1044, %v1002, %v1000
    %v1046 = vsel %vm1044, %v1003, %v1001
    %1049 = vmatpush.msra.mxu0 %v1019
    %1050 = vmatpush.msra.mxu0 %v1018
    %1051 = vmatpush.msra.mxu0 %v1017
    %1052 = vmatpush.msra.mxu0 %v1016
    %1053 = vmatpush.msra.mxu0 %v1015
    %1054 = vmatpush.msra.mxu0 %v1014
    %1055 = vmatpush.msra.mxu0 %v1013
    %1056 = vmatpush.msra.mxu0 %v1012
    %1057 = vmatpush.msra.mxu0 %v1011
    %1058 = vmatpush.msra.mxu0 %v1010
    %1059 = vmatpush.msra.mxu0 %v1009
    %1060 = vmatpush.msra.mxu0 %v1008
    %1061 = vmatpush.msra.mxu0 %v1007
    %1062 = vmatpush.msra.mxu0 %v1006
    %1063 = vmatpush.msra.mxu0 %v1005
    %1064 = vmatpush.msra.mxu0 %v1004
    %1065 = vmatmul.f32.gmra.mxu0 %v1045
    %v1066 = vpop.f32.mrf.mxu0
    %v1067 = vadd.f32 %v1038, %v1066
    %1068 = vdwg.mxu0
    %1069 = vmatpush.msra.mxu0 %v1035
    %1070 = vmatpush.msra.mxu0 %v1034
    %1071 = vmatpush.msra.mxu0 %v1033
    %1072 = vmatpush.msra.mxu0 %v1032
    %1073 = vmatpush.msra.mxu0 %v1031
    %1074 = vmatpush.msra.mxu0 %v1030
    %1075 = vmatpush.msra.mxu0 %v1029
    %1076 = vmatpush.msra.mxu0 %v1028
    %1077 = vmatpush.msra.mxu0 %v1027
    %1078 = vmatpush.msra.mxu0 %v1026
    %1079 = vmatpush.msra.mxu0 %v1025
    %1080 = vmatpush.msra.mxu0 %v1024
    %1081 = vmatpush.msra.mxu0 %v1023
    %1082 = vmatpush.msra.mxu0 %v1022
    %1083 = vmatpush.msra.mxu0 %v1021
    %1084 = vmatpush.msra.mxu0 %v1020
    %1085 = vmatmul.f32.gmra.mxu0 %v1046
    %v1086 = vpop.f32.mrf.mxu0
    %v1087 = vadd.f32 %v1067, %v1086
    %1088 = vdwg.mxu0
    %1089 = vst [vmem:[#allocation2] sm:$0x3] %v1087
    // Predicated region
    $region22: #{shape_branch_se_apply.1} parent=1 // pred_check
      _
    $region23: #{shape_branch_se_apply.1} parent=1 // pred_check_branch
      %1091 = sbr.rel (0) target = $region25
    $region24: #{shape_branch_se_apply.1} parent=1 // pred_region
      %1093 = vsyncadd [#allocation3], 0
      %s1095 = sshll.u32 [#allocation2], 4
      %s1096 = int_to_ptr.vmem [resolvable:$true] %s1095
      %s1097 = sshll.u32 %s5, 4
      %s1098 = int_to_ptr.hbm [resolvable:$true] %s1097
      %1100 = dma.vmem_to_hbm [thread:$0]  %s1096, 32, %s1098, [#allocation3]
    $region25: #{shape_branch_se_apply.1} parent=1 // pred_fallthru
      _
    // Predicated region
    $region26: #{shape_branch_se_apply.1} parent=1 // pred_check
      _
    $region27: #{shape_branch_se_apply.1} parent=1 // pred_check_branch
      %1102 = sbr.rel (0) target = $region29
    $region28: #{shape_branch_se_apply.1} parent=1 // pred_region
      %1104 = dma.done [#allocation3], 32
    $region29: #{shape_branch_se_apply.1} parent=1 // pred_fallthru
      _
    %1105 = vsyncpa [#allocation3], 1

</llo_original>
